<compile_context>
chip_gen: v5e
topology: v5e:2x2
jax: 0.10.0
libtpu: 0.0.40
codegen_flags: <defaults>
</compile_context>

<pallas_src>
import functools

import jax
import jax.numpy as jnp
from jax import lax
from jax.experimental import pallas as pl
from jax.experimental.pallas import tpu as pltpu

NUM_CLASSES = 6      # F.one_hot(target, 6)
SMOOTH = 1.0
P_POW = 2
IGNORE_INDEX = 255   # outside [0, 6) -> no class is skipped

# Max lanes per spatial tile.  (1, C, 65536) f32 block = 1.5 MiB (x2 buffers),
# (1, 1, 65536) i32 label block is sublane-padded to 8 rows = 2 MiB (x2), plus
# a handful of (8-sublane padded, 65536) f32 temporaries -> ~18-25 MiB live.
MAX_TILE_HW = 65536
# Fits all generations: > the working set above, < v7x's 64 MiB physical VMEM,
# and overrides v5e's 16 MiB default scoped limit.
VMEM_LIMIT_BYTES = 48 * 1024 * 1024


def _choose_tiling(hw, n_batch, max_tile):
    """Pick (tile_hw, num_tiles, hw_pad) for the spatial axis.

    Preference order: no wrapper-side padding (tile divides hw), even tile
    count (so the v7x 2-way spatial split is free), tiles as large as possible
    (amortize the ~0.35us per-grid-step overhead).
    """
    max_tile = max(128, (max_tile // 128) * 128)
    hw_ceil = -(-hw // 128) * 128
    if hw_ceil <= max_tile:
        # Single-tile image.  Split it in two only when the batch axis alone
        # would leave a v7x TensorCore idle (odd N); for even N the split would
        # just add grid steps on v5e/v6e.
        if n_batch % 2 == 1 and hw_ceil >= 256 and hw_ceil % 256 == 0:
            return hw_ceil // 2, 2, hw_ceil
        return hw_ceil, 1, hw_ceil
    if hw % 128 == 0:
        # Prefer a divisor tile with an even tile count, then any divisor.
        # Never drop below max_tile//2: a pathological divisor (e.g. 128)
        # would cost far more in per-step overhead than one jnp.pad.
        for want_even in (True, False):
            for cand in range(max_tile, max_tile // 2 - 1, -128):
                if hw % cand == 0 and (not want_even or (hw // cand) % 2 == 0):
                    return cand, hw // cand, hw
    num_tiles = -(-hw // max_tile)
    return max_tile, num_tiles, num_tiles * max_tile


def _dice_kernel(pred_ref, tgt_ref, num_out_ref, den_out_ref,
                 num_acc, den_acc, *, mask_pad):
    """Grid = (hw-split [parallel], batch [parallel], hw-tile [arbitrary]).

    pred_ref    : (1, C, T) logits (native dtype, cast to f32 here)
    tgt_ref     : (1, 1, T) int32 labels (padded positions are -1)
    num_out_ref : (1, 1, C, 128) f32 per-(split,batch) partial numerator sums
    den_out_ref : (1, 1, C, 128) f32 per-(split,batch) partial denominator sums
    num_acc/den_acc : (C, 1) f32 VMEM scratch accumulators
    """
    t = pl.program_id(2)

    @pl.when(t == 0)
    def _():
        num_acc[...] = jnp.zeros_like(num_acc)
        den_acc[...] = jnp.zeros_like(den_acc)

    logits = pred_ref[0].astype(jnp.float32)          # (C, T)
    labels = tgt_ref[0]                               # (1, T) int32

    # Numerically stable softmax over the class (sublane) axis.  The divide is
    # one EUP approximate reciprocal per column + a broadcast multiply instead
    # of a per-element VPU divide over the whole (C, T) tile.
    m = jnp.max(logits, axis=0, keepdims=True)
    e = jnp.exp(logits - m)
    inv_s = pl.reciprocal(jnp.sum(e, axis=0, keepdims=True), approx=True)
    p = e * inv_s                                     # (C, T)

    if mask_pad:
        # Only emitted when the wrapper actually padded the spatial axis: zero
        # padded columns so they do not leak into sum(p^2).  (Padded labels are
        # -1, so they can never one-hot match a class below.)
        p = jnp.where(labels >= 0, p, 0.0)

    # Trimmed VALU chain: selects instead of one-hot astype + multiply, and a
    # single lane reduction for the denominator (p^2 + one-hot count).
    cls = lax.broadcasted_iota(jnp.int32, p.shape, 0)
    match = labels == cls                             # (C, T) bool
    num_term = jnp.where(match, p, 0.0)
    den_term = p * p + jnp.where(match, 1.0, 0.0)

    num_acc[...] += jnp.sum(num_term, axis=-1, keepdims=True)
    den_acc[...] += jnp.sum(den_term, axis=-1, keepdims=True)

    @pl.when(t == pl.num_programs(2) - 1)
    def _():
        c = num_acc.shape[0]
        # Lane-dense stores of the raw per-class partial sums; smooth, the
        # exact divide and the mean are done in the wrapper.
        num_out_ref[...] = jnp.broadcast_to(num_acc[...].reshape(1, 1, c, 1),
                                            num_out_ref.shape)
        den_out_ref[...] = jnp.broadcast_to(den_acc[...].reshape(1, 1, c, 1),
                                            den_out_ref.shape)


def dice_loss(predict, target, *, smooth=SMOOTH, num_classes=NUM_CLASSES,
              max_tile_hw=MAX_TILE_HW):
    """predict: [N, C, H, W] float logits (f32 or bf16); target: [N, H, W] ints."""
    N, C, H, W = predict.shape
    assert C == num_classes
    assert target.shape == (N, H, W), (
        "spatial-size mismatch path (bilinear interpolate) not implemented")

    hw = H * W
    tile_hw, num_tiles, hw_pad = _choose_tiling(hw, N, max_tile_hw)
    hw_split = 2 if num_tiles % 2 == 0 else 1
    tiles_per_split = num_tiles // hw_split

    # No dtype upcast in HBM: reshape only (free), cast happens in-kernel.
    pred3 = predict.reshape(N, C, hw)
    tgt3 = target.astype(jnp.int32).reshape(N, 1, hw)

    mask_pad = hw_pad != hw                           # static Python check
    if mask_pad:
        # Rare case (no clean divisor tile): pad once; padded labels are -1 so
        # they never one-hot match, padded probs are masked in-kernel.
        pred3 = jnp.pad(pred3, ((0, 0), (0, 0), (0, hw_pad - hw)))
        tgt3 = jnp.pad(tgt3, ((0, 0), (0, 0), (0, hw_pad - hw)),
                       constant_values=-1)

    kernel = functools.partial(_dice_kernel, mask_pad=mask_pad)

    num_out, den_out = pl.pallas_call(
        kernel,
        out_shape=(
            jax.ShapeDtypeStruct((hw_split, N, C, 128), jnp.float32),
            jax.ShapeDtypeStruct((hw_split, N, C, 128), jnp.float32),
        ),
        grid_spec=pltpu.PrefetchScalarGridSpec(
            num_scalar_prefetch=0,
            grid=(hw_split, N, tiles_per_split),
            in_specs=[
                pl.BlockSpec((1, C, tile_hw),
                             lambda s, n, t: (n, 0, s * tiles_per_split + t)),
                pl.BlockSpec((1, 1, tile_hw),
                             lambda s, n, t: (n, 0, s * tiles_per_split + t)),
            ],
            out_specs=[
                pl.BlockSpec((1, 1, C, 128), lambda s, n, t: (s, n, 0, 0)),
                pl.BlockSpec((1, 1, C, 128), lambda s, n, t: (s, n, 0, 0)),
            ],
            scratch_shapes=[
                pltpu.VMEM((C, 1), jnp.float32),      # num accumulator
                pltpu.VMEM((C, 1), jnp.float32),      # den accumulator
            ],
        ),
        compiler_params=pltpu.CompilerParams(
            dimension_semantics=("parallel", "parallel", "arbitrary"),
            vmem_limit_bytes=VMEM_LIMIT_BYTES),
    )(pred3, tgt3)

    # Tiny final combine in the wrapper: ratio of (cross-split) sums with an
    # EXACT divide, then the mean over batch and classes.
    num = jnp.sum(num_out[:, :, :, 0], axis=0) + smooth   # (N, C)
    den = jnp.sum(den_out[:, :, :, 0], axis=0) + smooth   # (N, C)
    loss = 1.0 - num / den
    return jnp.sum(loss) / (N * C)


def dice_loss_ref(predict, target, *, smooth=SMOOTH, num_classes=NUM_CLASSES):
    """Pure-JAX reference mirroring the PyTorch module."""
    N, C, H, W = predict.shape
    p = jax.nn.softmax(predict.astype(jnp.float32), axis=1)
    t = jax.nn.one_hot(target, num_classes, dtype=jnp.float32)       # N,H,W,C
    t = jnp.transpose(t, (0, 3, 1, 2))                               # N,C,H,W
    total = 0.0
    for i in range(C):
        if i == IGNORE_INDEX:
            continue
        pi = p[:, i].reshape(N, -1)
        ti = t[:, i].reshape(N, -1)
        num = jnp.sum(pi * ti, axis=1) + smooth
        den = jnp.sum(pi ** P_POW + ti ** P_POW, axis=1) + smooth
        total = total + jnp.mean(1.0 - num / den)
    return total / C


if __name__ == "__main__":
    key = jax.random.PRNGKey(0)
    k1, k2 = jax.random.split(key)

    N, C, H, W = 2, NUM_CLASSES, 16, 16
    predict = jax.random.normal(k1, (N, C, H, W), dtype=jnp.float32)
    target = jax.random.randint(k2, (N, H, W), 0, NUM_CLASSES, dtype=jnp.int32)

    def _check(pred, tgt, **kw):
        out = jax.block_until_ready(dice_loss(pred, tgt, **kw))
        ref = jax.block_until_ready(dice_loss_ref(pred.astype(jnp.float32), tgt))
        # Tolerance covers the EUP approximate reciprocal in the softmax
        # normalization (the dice ratio itself is now an exact divide).
        assert jnp.allclose(out, ref, atol=1e-3, rtol=1e-3), (out, ref)

    # 1) baseline: even batch, single spatial tile, no split.
    _check(predict, target)
    # 2) N == 1: exercises the 2-way HW split (both v7x TensorCores busy).
    _check(predict[:1], target[:1])
    # 3) bf16 logits: native-dtype HBM reads, in-kernel cast to f32.
    _check(predict.astype(jnp.bfloat16), target)
    # 4) non-128-multiple spatial size: exercises the padded / masked path.
    k3, k4 = jax.random.split(k1)
    pred_odd = jax.random.normal(k3, (2, C, 20, 20), dtype=jnp.float32)
    tgt_odd = jax.random.randint(k4, (2, 20, 20), 0, C, dtype=jnp.int32)
    _check(pred_odd, tgt_odd, max_tile_hw=512)
    # 5) multi-tile accumulation + split (small tile cap forces several tiles).
    pred_big = jax.random.normal(k3, (1, C, 48, 48), dtype=jnp.float32)
    tgt_big = jax.random.randint(k4, (1, 48, 48), 0, C, dtype=jnp.int32)
    _check(pred_big, tgt_big, max_tile_hw=512)

    print("KERNEL_OK")
</pallas_src>

<mosaic_0001>
module attributes {stable_mosaic.version = 11 : i64} {
  func.func @_dice_kernel(%arg0: i32, %arg1: i32, %arg2: i32, %arg3: memref<1x6x256xf32, #tpu.memory_space<vmem>>, %arg4: memref<1x1x256xi32, #tpu.memory_space<vmem>>, %arg5: memref<1x1x6x128xf32, #tpu.memory_space<vmem>>, %arg6: memref<1x1x6x128xf32, #tpu.memory_space<vmem>>, %arg7: memref<6x1xf32, #tpu.memory_space<vmem>>, %arg8: memref<6x1xf32, #tpu.memory_space<vmem>>) attributes {dimension_semantics = [#tpu.dimension_semantics<parallel>, #tpu.dimension_semantics<parallel>, #tpu.dimension_semantics<arbitrary>], iteration_bounds = array<i64: 1, 2, 1>, scalar_prefetch = 0 : i64, scratch_operands = 2 : i64, tpu.core_type = #tpu.core_type<tc>, window_params = [{transform_indices = @transform_0, window_bounds = array<i64: 1, 6, 256>}, {transform_indices = @transform_1, window_bounds = array<i64: 1, 1, 256>}, {transform_indices = @transform_2, window_bounds = array<i64: 1, 1, 6, 128>}, {transform_indices = @transform_3, window_bounds = array<i64: 1, 1, 6, 128>}]} {
    %c0_i32 = arith.constant 0 : i32
    %0 = arith.cmpi eq, %arg2, %c0_i32 : i32
    %1 = arith.extui %0 : i1 to i32
    %c0_i32_0 = arith.constant 0 : i32
    %2 = arith.cmpi ne, %1, %c0_i32_0 : i32
    scf.if %2 {
      %cst_22 = arith.constant 0.000000e+00 : f32
      %40 = vector.broadcast %cst_22 : f32 to vector<6x1xf32>
      %c0_23 = arith.constant 0 : index
      %c0_24 = arith.constant 0 : index
      %41 = vector.load %arg7[%c0_23, %c0_24] : memref<6x1xf32, #tpu.memory_space<vmem>>, vector<6x1xf32>
      tpu.vector_store %arg7[%c0_23, %c0_24], %40 {strides = array<i32>} : memref<6x1xf32, #tpu.memory_space<vmem>>, vector<6x1xf32>,
      %cst_25 = arith.constant 0.000000e+00 : f32
      %42 = vector.broadcast %cst_25 : f32 to vector<6x1xf32>
      %c0_26 = arith.constant 0 : index
      %c0_27 = arith.constant 0 : index
      %43 = vector.load %arg8[%c0_26, %c0_27] : memref<6x1xf32, #tpu.memory_space<vmem>>, vector<6x1xf32>
      tpu.vector_store %arg8[%c0_26, %c0_27], %42 {strides = array<i32>} : memref<6x1xf32, #tpu.memory_space<vmem>>, vector<6x1xf32>,
    } else {
    }
    %c0 = arith.constant 0 : index
    %c0_1 = arith.constant 0 : index
    %c0_2 = arith.constant 0 : index
    %3 = vector.load %arg3[%c0, %c0_1, %c0_2] : memref<1x6x256xf32, #tpu.memory_space<vmem>>, vector<1x6x256xf32>
    %4 = vector.shape_cast %3 : vector<1x6x256xf32> to vector<6x256xf32>
    %c0_3 = arith.constant 0 : index
    %c0_4 = arith.constant 0 : index
    %c0_5 = arith.constant 0 : index
    %5 = vector.load %arg4[%c0_3, %c0_4, %c0_5] : memref<1x1x256xi32, #tpu.memory_space<vmem>>, vector<1x1x256xi32>
    %6 = vector.shape_cast %5 : vector<1x1x256xi32> to vector<1x256xi32>
    %cst = arith.constant dense<0xFF800000> : vector<256xf32>
    %7 = vector.multi_reduction <maximumf>, %4, %cst [0] : vector<6x256xf32> to vector<256xf32>
    %8 = vector.shape_cast %7 : vector<256xf32> to vector<1x256xf32>
    %9 = vector.broadcast %8 : vector<1x256xf32> to vector<6x256xf32>
    %10 = arith.subf %4, %9 : vector<6x256xf32>
    %11 = math.exp %10 : vector<6x256xf32>
    %cst_6 = arith.constant dense<0.000000e+00> : vector<256xf32>
    %12 = vector.multi_reduction <add>, %11, %cst_6 [0] : vector<6x256xf32> to vector<256xf32>
    %13 = vector.shape_cast %12 : vector<256xf32> to vector<1x256xf32>
    %14 = tpu.reciprocal %13 {approx = true} : vector<1x256xf32> -> vector<1x256xf32>
    %15 = vector.broadcast %14 : vector<1x256xf32> to vector<6x256xf32>
    %16 = arith.mulf %11, %15 : vector<6x256xf32>
    %17 = tpu.iota {dimensions = array<i32: 0>} : vector<6x256xi32>
    %18 = vector.broadcast %6 : vector<1x256xi32> to vector<6x256xi32>
    %19 = arith.cmpi eq, %18, %17 : vector<6x256xi32>
    %cst_7 = arith.constant 0.000000e+00 : f32
    %20 = vector.broadcast %cst_7 : f32 to vector<6x256xf32>
    %21 = arith.select %19, %16, %20 : vector<6x256xi1>, vector<6x256xf32>
    %22 = arith.mulf %16, %16 : vector<6x256xf32>
    %cst_8 = arith.constant 1.000000e+00 : f32
    %cst_9 = arith.constant 0.000000e+00 : f32
    %23 = vector.broadcast %cst_8 : f32 to vector<6x256xf32>
    %24 = vector.broadcast %cst_9 : f32 to vector<6x256xf32>
    %25 = arith.select %19, %23, %24 : vector<6x256xi1>, vector<6x256xf32>
    %26 = arith.addf %22, %25 : vector<6x256xf32>
    %c0_10 = arith.constant 0 : index
    %c0_11 = arith.constant 0 : index
    %27 = vector.load %arg7[%c0_10, %c0_11] : memref<6x1xf32, #tpu.memory_space<vmem>>, vector<6x1xf32>
    %cst_12 = arith.constant dense<0.000000e+00> : vector<6xf32>
    %28 = vector.multi_reduction <add>, %21, %cst_12 [1] : vector<6x256xf32> to vector<6xf32>
    %29 = vector.shape_cast %28 : vector<6xf32> to vector<6x1xf32>
    %30 = arith.addf %27, %29 : vector<6x1xf32>
    %c0_13 = arith.constant 0 : index
    %c0_14 = arith.constant 0 : index
    %31 = vector.load %arg7[%c0_13, %c0_14] : memref<6x1xf32, #tpu.memory_space<vmem>>, vector<6x1xf32>
    tpu.vector_store %arg7[%c0_13, %c0_14], %30 {strides = array<i32>} : memref<6x1xf32, #tpu.memory_space<vmem>>, vector<6x1xf32>,
    %c0_15 = arith.constant 0 : index
    %c0_16 = arith.constant 0 : index
    %32 = vector.load %arg8[%c0_15, %c0_16] : memref<6x1xf32, #tpu.memory_space<vmem>>, vector<6x1xf32>
    %cst_17 = arith.constant dense<0.000000e+00> : vector<6xf32>
    %33 = vector.multi_reduction <add>, %26, %cst_17 [1] : vector<6x256xf32> to vector<6xf32>
    %34 = vector.shape_cast %33 : vector<6xf32> to vector<6x1xf32>
    %35 = arith.addf %32, %34 : vector<6x1xf32>
    %c0_18 = arith.constant 0 : index
    %c0_19 = arith.constant 0 : index
    %36 = vector.load %arg8[%c0_18, %c0_19] : memref<6x1xf32, #tpu.memory_space<vmem>>, vector<6x1xf32>
    tpu.vector_store %arg8[%c0_18, %c0_19], %35 {strides = array<i32>} : memref<6x1xf32, #tpu.memory_space<vmem>>, vector<6x1xf32>,
    %c0_i32_20 = arith.constant 0 : i32
    %37 = arith.cmpi eq, %arg2, %c0_i32_20 : i32
    %38 = arith.extui %37 : i1 to i32
    %c0_i32_21 = arith.constant 0 : i32
    %39 = arith.cmpi ne, %38, %c0_i32_21 : i32
    scf.if %39 {
      %c0_22 = arith.constant 0 : index
      %c0_23 = arith.constant 0 : index
      %40 = vector.load %arg7[%c0_22, %c0_23] : memref<6x1xf32, #tpu.memory_space<vmem>>, vector<6x1xf32>
      %41 = vector.shape_cast %40 : vector<6x1xf32> to vector<1x1x6x1xf32>
      %42 = vector.shape_cast %41 : vector<1x1x6x1xf32> to vector<1x1x6x1xf32>
      %43 = vector.broadcast %42 : vector<1x1x6x1xf32> to vector<1x1x6x128xf32>
      %c0_24 = arith.constant 0 : index
      %c0_25 = arith.constant 0 : index
      %c0_26 = arith.constant 0 : index
      %c0_27 = arith.constant 0 : index
      %44 = vector.load %arg5[%c0_24, %c0_25, %c0_26, %c0_27] : memref<1x1x6x128xf32, #tpu.memory_space<vmem>>, vector<1x1x6x128xf32>
      tpu.vector_store %arg5[%c0_24, %c0_25, %c0_26, %c0_27], %43 {strides = array<i32>} : memref<1x1x6x128xf32, #tpu.memory_space<vmem>>, vector<1x1x6x128xf32>,
      %c0_28 = arith.constant 0 : index
      %c0_29 = arith.constant 0 : index
      %45 = vector.load %arg8[%c0_28, %c0_29] : memref<6x1xf32, #tpu.memory_space<vmem>>, vector<6x1xf32>
      %46 = vector.shape_cast %45 : vector<6x1xf32> to vector<1x1x6x1xf32>
      %47 = vector.shape_cast %46 : vector<1x1x6x1xf32> to vector<1x1x6x1xf32>
      %48 = vector.broadcast %47 : vector<1x1x6x1xf32> to vector<1x1x6x128xf32>
      %c0_30 = arith.constant 0 : index
      %c0_31 = arith.constant 0 : index
      %c0_32 = arith.constant 0 : index
      %c0_33 = arith.constant 0 : index
      %49 = vector.load %arg6[%c0_30, %c0_31, %c0_32, %c0_33] : memref<1x1x6x128xf32, #tpu.memory_space<vmem>>, vector<1x1x6x128xf32>
      tpu.vector_store %arg6[%c0_30, %c0_31, %c0_32, %c0_33], %48 {strides = array<i32>} : memref<1x1x6x128xf32, #tpu.memory_space<vmem>>, vector<1x1x6x128xf32>,
    } else {
    }
    return
  }
  func.func @transform_0(%arg0: i32, %arg1: i32, %arg2: i32) -> (i32, i32, i32) {
    %c1_i32 = arith.constant 1 : i32
    %0 = arith.muli %arg0, %c1_i32 : i32
    %1 = arith.addi %0, %arg2 : i32
    %c0_i32 = arith.constant 0 : i32
    %c0_i32_0 = arith.constant 0 : i32
    return %arg1, %c0_i32, %1 : i32, i32, i32
  }
  func.func @transform_1(%arg0: i32, %arg1: i32, %arg2: i32) -> (i32, i32, i32) {
    %c1_i32 = arith.constant 1 : i32
    %0 = arith.muli %arg0, %c1_i32 : i32
    %1 = arith.addi %0, %arg2 : i32
    %c0_i32 = arith.constant 0 : i32
    %c0_i32_0 = arith.constant 0 : i32
    return %arg1, %c0_i32, %1 : i32, i32, i32
  }
  func.func @transform_2(%arg0: i32, %arg1: i32, %arg2: i32) -> (i32, i32, i32, i32) {
    %c0_i32 = arith.constant 0 : i32
    %c0_i32_0 = arith.constant 0 : i32
    %c0_i32_1 = arith.constant 0 : i32
    return %arg0, %arg1, %c0_i32, %c0_i32_0 : i32, i32, i32, i32
  }
  func.func @transform_3(%arg0: i32, %arg1: i32, %arg2: i32) -> (i32, i32, i32, i32) {
    %c0_i32 = arith.constant 0 : i32
    %c0_i32_0 = arith.constant 0 : i32
    %c0_i32_1 = arith.constant 0 : i32
    return %arg0, %arg1, %c0_i32, %c0_i32_0 : i32, i32, i32, i32
  }
}

</mosaic_0001>

<llo_original>
// kernel: tpu_custom_call.1
$region0: #{tpu_custom_call.1}
  #allocation0 [shape = 'u32[]', space=smem, size = 0x4, offset = 0x4, fixed_abs, tag = 'smem constant byte address 0x4 - core index']
  #allocation1 [shape = 'u32[72,128]{1,0:T(1,128)}', space=vmem, size = 0x9000, scoped, tag = 'internal scratch']
  #allocation2 [shape = 'f32[6,1]{1,0:T(8,128)}', space=vmem, size = 0x1000, scoped, tag = 'scratch operand']
  #allocation3 [shape = 'f32[6,1]{1,0:T(8,128)}', space=vmem, size = 0x1000, scoped, tag = 'scratch operand']
  %s0 = inlined_call_operand.vmem [shape: f32[2,6,256], index: 0, kind: input, shape index: {}]
  %s1 = inlined_call_operand.vmem [shape: s32[2,1,256], index: 1, kind: input, shape index: {}]
  %s2 = inlined_call_operand.vmem [shape: f32[1,2,6,128], index: 2, kind: output, shape index: {0}]
  %s3 = inlined_call_operand.vmem [shape: f32[1,2,6,128], index: 3, kind: output, shape index: {1}]
  %4 = xla_tuple %s2, %s3
  %s5 = sld [smem:[#allocation0]]
  $region57: #{tpu_custom_call.1} parent=0
    _
  %s7 = ssub.s32 1, %s5
  %s8 = scalar_select 0, %s7, %s5
  loop: start=0, step=1, limit=4
  $region2: #{tpu_custom_call.1} parent=0 // loop_pre_header
    _
  $region3: #{tpu_custom_call.1} parent=0 // loop_header
    %s10 = sphi 0, %s14
    %p11 = scmp.ge.s32.totalorder %s10, 4
    %s17 = sphi 0, %s36
    %s18 = sphi 0, %s32
    %s19 = sphi 0, %s28
    %s20 = sphi 0, %s17
    %s21 = sphi 0, %s18
    %s22 = sphi 0, %s19
    %s23 = sphi 0, %s20
    %s24 = sphi 0, %s21
    %s25 = sphi 0, %s22
    %s43 = sphi 0, %s45
    %s46 = sphi 0, %s43
    %s47 = sphi 0, %s46
    %s63 = sphi 0, %s47
    %s73 = sphi 0, %s75
    %s76 = sphi 0, %s73
    %s77 = sphi 0, %s76
    %s93 = sphi 0, %s77
    %s101 = sphi 0, %s103
    %s104 = sphi 0, %s101
    %s105 = sphi 0, %s104
    %s121 = sphi 0, %s105
    %s129 = sphi 0, %s131
    %s132 = sphi 0, %s129
    %s133 = sphi 0, %s132
    %s149 = sphi 0, %s133
  $region4: #{tpu_custom_call.1} parent=0 // loop_header_branch
    %13 = sbr.rel (%p11) target = $region8
  $region5: #{tpu_custom_call.1} parent=0 // loop_body
    %s15 = ssub.s32 %s10, 1
    %s16 = ssub.s32 %s10, 2
    %s26 = sadd.s32 1, %s19
    %p27 = scmp.ge.s32.totalorder %s26, 1
    %s28 = scalar_select %p27, 0, %s26
    %s29 = sadd.s32 1, %s18
    %s30 = scalar_select %p27, %s29, %s18
    %p31 = scmp.ge.s32.totalorder %s30, 2
    %s32 = scalar_select %p31, 0, %s30
    %s33 = sadd.s32 1, %s17
    %s34 = scalar_select %p31, %s33, %s17
    %p35 = scmp.ge.s32.totalorder %s34, 1
    %s36 = scalar_select %p35, 0, %s34
    %s37 = sadd.s32 %s17, %s19
    %s38 = sadd.s32 %s36, %s28
    %s39 = ssub.s32 %s18, %s32
    %s40 = ssub.s32 %s37, %s38
    %s41 = sor.u32 %s39, %s40
    %p42 = scmp.eq.s32.totalorder %s41, 0
    %s44 = sadd.s32 %s43, 1
    %s45 = scalar_select %p42, %s43, %s44
    %p48 = pneg %p42
    %p49 = scmp.eq.s32.totalorder %s10, 1
    %p50 = por %p48, %p49
    %p51 = scmp.ne.s32.totalorder %s43, %s46
    %p52 = scmp.eq.s32.totalorder %s10, 0
    %p53 = por %p51, %p52
    %p54 = scmp.ne.s32.totalorder %s43, %s46
    %p55 = scmp.eq.s32.totalorder %s15, 1
    %p56 = por %p54, %p55
    %p57 = scmp.ne.s32.totalorder %s46, %s47
    %p58 = scmp.eq.s32.totalorder %s15, 0
    %p59 = por %p57, %p58
    %p60 = scmp.ne.s32.totalorder %s46, %s47
    %p61 = scmp.eq.s32.totalorder %s16, 1
    %p62 = por %p60, %p61
    %p64 = scmp.ne.s32.totalorder %s47, %s63
    %p65 = scmp.eq.s32.totalorder %s16, 0
    %p66 = por %p64, %p65
    %s67 = sadd.s32 %s17, %s19
    %s68 = sadd.s32 %s36, %s28
    %s69 = ssub.s32 %s18, %s32
    %s70 = ssub.s32 %s67, %s68
    %s71 = sor.u32 %s69, %s70
    %p72 = scmp.eq.s32.totalorder %s71, 0
    %s74 = sadd.s32 %s73, 1
    %s75 = scalar_select %p72, %s73, %s74
    %p78 = pneg %p72
    %p79 = scmp.eq.s32.totalorder %s10, 1
    %p80 = por %p78, %p79
    %p81 = scmp.ne.s32.totalorder %s73, %s76
    %p82 = scmp.eq.s32.totalorder %s10, 0
    %p83 = por %p81, %p82
    %p84 = scmp.ne.s32.totalorder %s73, %s76
    %p85 = scmp.eq.s32.totalorder %s15, 1
    %p86 = por %p84, %p85
    %p87 = scmp.ne.s32.totalorder %s76, %s77
    %p88 = scmp.eq.s32.totalorder %s15, 0
    %p89 = por %p87, %p88
    %p90 = scmp.ne.s32.totalorder %s76, %s77
    %p91 = scmp.eq.s32.totalorder %s16, 1
    %p92 = por %p90, %p91
    %p94 = scmp.ne.s32.totalorder %s77, %s93
    %p95 = scmp.eq.s32.totalorder %s16, 0
    %p96 = por %p94, %p95
    %s97 = ssub.s32 %s17, %s36
    %s98 = ssub.s32 %s18, %s32
    %s99 = sor.u32 %s97, %s98
    %p100 = scmp.eq.s32.totalorder %s99, 0
    %s102 = sadd.s32 %s101, 1
    %s103 = scalar_select %p100, %s101, %s102
    %p106 = pneg %p100
    %p107 = scmp.eq.s32.totalorder %s10, 1
    %p108 = por %p106, %p107
    %p109 = scmp.ne.s32.totalorder %s101, %s104
    %p110 = scmp.eq.s32.totalorder %s10, 0
    %p111 = por %p109, %p110
    %p112 = scmp.ne.s32.totalorder %s101, %s104
    %p113 = scmp.eq.s32.totalorder %s15, 1
    %p114 = por %p112, %p113
    %p115 = scmp.ne.s32.totalorder %s104, %s105
    %p116 = scmp.eq.s32.totalorder %s15, 0
    %p117 = por %p115, %p116
    %p118 = scmp.ne.s32.totalorder %s104, %s105
    %p119 = scmp.eq.s32.totalorder %s16, 1
    %p120 = por %p118, %p119
    %p122 = scmp.ne.s32.totalorder %s105, %s121
    %p123 = scmp.eq.s32.totalorder %s16, 0
    %p124 = por %p122, %p123
    %s125 = ssub.s32 %s17, %s36
    %s126 = ssub.s32 %s18, %s32
    %s127 = sor.u32 %s125, %s126
    %p128 = scmp.eq.s32.totalorder %s127, 0
    %s130 = sadd.s32 %s129, 1
    %s131 = scalar_select %p128, %s129, %s130
    %p134 = pneg %p128
    %p135 = scmp.eq.s32.totalorder %s10, 1
    %p136 = por %p134, %p135
    %p137 = scmp.ne.s32.totalorder %s129, %s132
    %p138 = scmp.eq.s32.totalorder %s10, 0
    %p139 = por %p137, %p138
    %p140 = scmp.ne.s32.totalorder %s129, %s132
    %p141 = scmp.eq.s32.totalorder %s15, 1
    %p142 = por %p140, %p141
    %p143 = scmp.ne.s32.totalorder %s132, %s133
    %p144 = scmp.eq.s32.totalorder %s15, 0
    %p145 = por %p143, %p144
    %p146 = scmp.ne.s32.totalorder %s132, %s133
    %p147 = scmp.eq.s32.totalorder %s16, 1
    %p148 = por %p146, %p147
    %p150 = scmp.ne.s32.totalorder %s133, %s149
    %p151 = scmp.eq.s32.totalorder %s16, 0
    %p152 = por %p150, %p151
    %p153 = scmp.le.s32.totalorder 1, %s10
    %p154 = scmp.lt.s32.totalorder %s10, 3
    %p155 = pnand %p153, %p154
    %p156 = pneg %p155
    // Predicated region
    $region9: #{tpu_custom_call.1} parent=5 // pred_check
      _
    $region10: #{tpu_custom_call.1} parent=5 // pred_check_branch
      %158 = sbr.rel (%p155) target = $region12
    $region11: #{tpu_custom_call.1} parent=5 // pred_region
      %s159 = ssub.s32 %s10, 1
    $region12: #{tpu_custom_call.1} parent=5 // pred_fallthru
      _
    %p160 = scmp.lt.s32.totalorder %s10, 2
    // Predicated region
    $region13: #{tpu_custom_call.1} parent=5 // pred_check
      %p161 = pneg %p160
    $region14: #{tpu_custom_call.1} parent=5 // pred_check_branch
      %163 = sbr.rel (%p161) target = $region16
    $region15: #{tpu_custom_call.1} parent=5 // pred_region
      // Predicated region
      $region17: #{tpu_custom_call.1} parent=15 // pred_check
        %p164 = pneg %p53
      $region18: #{tpu_custom_call.1} parent=15 // pred_check_branch
        %166 = sbr.rel (%p164) target = $region20
      $region19: #{tpu_custom_call.1} parent=15 // pred_region
        %s167 = sadd.s32 %s17, %s19
        %s168 = smul.u32 2, %s167
        %p169 = scmp.lt.s32.totalorder %s18, 1
        %s170 = scalar_select %p169, %s18, 1
        %p171 = scmp.lt.s32.totalorder %s168, 1
        %s172 = scalar_select %p171, %s168, 1
        %s173 = smul.addr %s170, 2
        %s174 = sadd.s32 %s172, %s173
        %s175 = smul.addr %s174, 8
        %s176 = scalar_lea.vmem %s0, %s175
        %s177 = sadd.s32 %s17, %s19
        %s178 = smul.u32 2, %s177
      $region20: #{tpu_custom_call.1} parent=15 // pred_fallthru
        _
      // Predicated region
      $region21: #{tpu_custom_call.1} parent=15 // pred_check
        %p179 = pneg %p83
      $region22: #{tpu_custom_call.1} parent=15 // pred_check_branch
        %181 = sbr.rel (%p179) target = $region24
      $region23: #{tpu_custom_call.1} parent=15 // pred_region
        %s182 = sadd.s32 %s17, %s19
        %s183 = smul.u32 2, %s182
        %p184 = scmp.lt.s32.totalorder %s18, 1
        %s185 = scalar_select %p184, %s18, 1
        %p186 = scmp.lt.s32.totalorder %s183, 1
        %s187 = scalar_select %p186, %s183, 1
        %s188 = smul.addr %s185, 2
        %s189 = sadd.s32 %s187, %s188
        %s190 = scalar_lea.vmem %s1, %s189
        %s191 = sadd.s32 %s17, %s19
        %s192 = smul.u32 2, %s191
      $region24: #{tpu_custom_call.1} parent=15 // pred_fallthru
        _
    $region16: #{tpu_custom_call.1} parent=5 // pred_fallthru
      _
    %p193 = scmp.le.s32.totalorder 1, %s10
    %p194 = scmp.lt.s32.totalorder %s10, 3
    %p195 = pnand %p193, %p194
    %p196 = pneg %p195
    // Predicated region
    $region25: #{tpu_custom_call.1} parent=5 // pred_check
      _
    $region26: #{tpu_custom_call.1} parent=5 // pred_check_branch
      %198 = sbr.rel (%p195) target = $region28
    $region27: #{tpu_custom_call.1} parent=5 // pred_region
      %s199 = ssub.s32 %s10, 1
      %s200 = sadd.s32 %s20, %s22
      %s201 = smul.u32 2, %s200
      %p202 = scmp.lt.s32.totalorder %s21, 1
      %s203 = scalar_select %p202, %s21, 1
      %p204 = scmp.lt.s32.totalorder %s201, 1
      %s205 = scalar_select %p204, %s201, 1
      %s206 = smul.addr %s203, 2
      %s207 = sadd.s32 %s205, %s206
      %s208 = smul.addr %s207, 8
      %s209 = scalar_lea.vmem %s0, %s208
      %p210 = pneg %p59
      %p211 = pneg %p56
      %s212 = sadd.s32 %s20, %s22
      %s213 = smul.u32 2, %s212
      %p214 = scmp.lt.s32.totalorder %s21, 1
      %s215 = scalar_select %p214, %s21, 1
      %p216 = scmp.lt.s32.totalorder %s213, 1
      %s217 = scalar_select %p216, %s213, 1
      %s218 = smul.addr %s215, 2
      %s219 = sadd.s32 %s217, %s218
      %s220 = scalar_lea.vmem %s1, %s219
      %p221 = pneg %p89
      %p222 = pneg %p86
      %p223 = pneg %p117
      %p224 = pneg %p114
      %p225 = scmp.lt.s32.totalorder %s20, 0
      %s226 = scalar_select %p225, %s20, 0
      %p227 = scmp.lt.s32.totalorder %s21, 1
      %s228 = scalar_select %p227, %s21, 1
      %s229 = smul.addr %s226, 2
      %s230 = sadd.s32 %s228, %s229
      %s231 = smul.addr %s230, 8
      %s232 = scalar_lea.vmem %s2, %s231
      %p233 = pneg %p145
      %p234 = pneg %p142
      %p235 = scmp.lt.s32.totalorder %s20, 0
      %s236 = scalar_select %p235, %s20, 0
      %p237 = scmp.lt.s32.totalorder %s21, 1
      %s238 = scalar_select %p237, %s21, 1
      %s239 = smul.addr %s236, 2
      %s240 = sadd.s32 %s238, %s239
      %s241 = smul.addr %s240, 8
      %s242 = scalar_lea.vmem %s3, %s241
      %s243 = sadd.s32 %s20, %s22
      %s244 = smul.u32 2, %s243
      %p245 = scmp.lt.s32.totalorder %s21, 1
      %s246 = scalar_select %p245, %s21, 1
      %p247 = scmp.lt.s32.totalorder %s244, 1
      %s248 = scalar_select %p247, %s244, 1
      %s249 = smul.addr %s246, 2
      %s250 = sadd.s32 %s248, %s249
      %s251 = smul.addr %s250, 8
      %s252 = scalar_lea.vmem %s0, %s251
      %s253 = sadd.s32 %s20, %s22
      %s254 = smul.u32 2, %s253
      %s255 = sadd.s32 %s20, %s22
      %s256 = smul.u32 2, %s255
      %p257 = scmp.lt.s32.totalorder %s21, 1
      %s258 = scalar_select %p257, %s21, 1
      %p259 = scmp.lt.s32.totalorder %s256, 1
      %s260 = scalar_select %p259, %s256, 1
      %s261 = smul.addr %s258, 2
      %s262 = sadd.s32 %s260, %s261
      %s263 = scalar_lea.vmem %s1, %s262
      %s264 = sadd.s32 %s20, %s22
      %s265 = smul.u32 2, %s264
      %p266 = scmp.lt.s32.totalorder %s20, 0
      %s267 = scalar_select %p266, %s20, 0
      %p268 = scmp.lt.s32.totalorder %s21, 1
      %s269 = scalar_select %p268, %s21, 1
      %s270 = smul.addr %s267, 2
      %s271 = sadd.s32 %s269, %s270
      %s272 = smul.addr %s271, 8
      %s273 = scalar_lea.vmem %s2, %s272
      %p274 = scmp.lt.s32.totalorder %s20, 0
      %s275 = scalar_select %p274, %s20, 0
      %p276 = scmp.lt.s32.totalorder %s21, 1
      %s277 = scalar_select %p276, %s21, 1
      %s278 = smul.addr %s275, 2
      %s279 = sadd.s32 %s277, %s278
      %s280 = smul.addr %s279, 8
      %s281 = scalar_lea.vmem %s3, %s280
      %p282 = scmp.eq.s32.totalorder %s22, 0
      // Predicated region
      $region29: #{tpu_custom_call.1} parent=27 // pred_check
        %p283 = pneg %p282
      $region30: #{tpu_custom_call.1} parent=27 // pred_check_branch
        %285 = sbr.rel (%p283) target = $region32
      $region31: #{tpu_custom_call.1} parent=27 // pred_region
        %vm286 = vcmask 5120
        %287 = vst.msk [vmem:[#allocation2] sm:$0x3f] %vm286, 0.0
        %288 = vst.msk [vmem:[#allocation3] sm:$0x3f] %vm286, 0.0
      $region32: #{tpu_custom_call.1} parent=27 // pred_fallthru
        _
      %v289 = vld [vmem:[%s252] sm:$0x3f]
      %v290 = vld [vmem:[%s252 + $0x8] sm:$0x3f]
      %v291 = vld [vmem:[%s263] sm:$0x3]
      %vm292 = vcmask 1045504
      %v293 = vsel %vm292, %v289, -inf
      %v294 = vrot.slane %v293, 4
      %v295 = vmax.f32 %v293, %v294
      %v296 = vrot.slane %v295, 2
      %v297 = vmax.f32 %v295, %v296
      %v298 = vrot.slane %v297, 1
      %v299 = vmax.f32 %v297, %v298
      %v300 = vsel %vm292, %v290, -inf
      %v301 = vrot.slane %v300, 4
      %v302 = vmax.f32 %v300, %v301
      %v303 = vrot.slane %v302, 2
      %v304 = vmax.f32 %v302, %v303
      %v305 = vrot.slane %v304, 1
      %v306 = vmax.f32 %v304, %v305
      %v307 = vsub.f32 %v289, %v299
      %v308 = vsub.f32 %v290, %v306
      %v309 = vmul.f32 %v307, 1.442695
      %v310 = vpow.pop %v309
      %v311 = vmul.f32 %v308, 1.442695
      %v312 = vpow.pop %v311
      %v313 = vsel %vm292, %v310, 0.0
      %v314 = vrot.slane %v313, 4
      %v315 = vadd.f32 %v313, %v314
      %v316 = vrot.slane %v315, 2
      %v317 = vadd.f32 %v315, %v316
      %v318 = vrot.slane %v317, 1
      %v319 = vadd.f32 %v317, %v318
      %v320 = vsel %vm292, %v312, 0.0
      %v321 = vrot.slane %v320, 4
      %v322 = vadd.f32 %v320, %v321
      %v323 = vrot.slane %v322, 2
      %v324 = vadd.f32 %v322, %v323
      %v325 = vrot.slane %v324, 1
      %v326 = vadd.f32 %v324, %v325
      %v327 = vrcp.pop %v319
      %v328 = vrcp.pop %v326
      %v329 = vmul.f32 %v310, %v327
      %v330 = vmul.f32 %v312, %v328
      %v331 = vlaneseq
      %v332 = vshrl.u32 %v331, 7
      %v333 = vperm.slane %v291, 0
      %v334 = vperm.slane %v291, 1
      %vm335 = vcmp.eq.s32.totalorder %v333, %v332
      %vm336 = vcmp.eq.s32.totalorder %v334, %v332
      %v337 = vsel %vm335, %v329, 0.0
      %v338 = vsel %vm336, %v330, 0.0
      %v339 = vmul.f32 %v329, %v329
      %v340 = vmul.f32 %v330, %v330
      %v341 = vsel %vm335, 1.0, 0.0
      %v342 = vsel %vm336, 1.0, 0.0
      %v343 = vadd.f32 %v339, %v341
      %v344 = vadd.f32 %v340, %v342
      %v345 = vld [vmem:[#allocation2] sm:$0x3f]
      %v346 = vsel %vm292, %v337, 0.0
      %v347 = vsel %vm292, %v338, 0.0
      %v348 = vadd.f32 %v346, %v347
      %349 = vadd.xlane.f32.xlu0 %v348
      %v350 = vpop.xlane.xlu0 %349
      %v351 = vadd.f32 %v345, %v350
      %vm352 = vcmask 5120
      %353 = vst.msk [vmem:[#allocation2] sm:$0x3f] %vm352, %v351
      %v354 = vld [vmem:[#allocation3] sm:$0x3f]
      %v355 = vsel %vm292, %v343, 0.0
      %v356 = vsel %vm292, %v344, 0.0
      %v357 = vadd.f32 %v355, %v356
      %358 = vadd.xlane.f32.xlu0 %v357
      %v359 = vpop.xlane.xlu0 %358
      %v360 = vadd.f32 %v354, %v359
      %361 = vst.msk [vmem:[#allocation3] sm:$0x3f] %vm352, %v360
      // Predicated region
      $region33: #{tpu_custom_call.1} parent=27 // pred_check
        %p362 = pneg %p282
      $region34: #{tpu_custom_call.1} parent=27 // pred_check_branch
        %364 = sbr.rel (%p362) target = $region36
      $region35: #{tpu_custom_call.1} parent=27 // pred_region
        %v365 = vld [vmem:[#allocation2] sm:$0x3f]
        %367 = vset.pattern.permute.xlu0 0
        %368 = vperm.xlu0 %367, %v365
        %v369 = vpop.permute.xlu0 %368
        %371 = vst [vmem:[%s273] sm:$0x3f] %v369
        %v372 = vld [vmem:[#allocation3] sm:$0x3f]
        %374 = vset.pattern.permute.xlu0 0
        %375 = vperm.xlu0 %374, %v372
        %v376 = vpop.permute.xlu0 %375
        %378 = vst [vmem:[%s281] sm:$0x3f] %v376
      $region36: #{tpu_custom_call.1} parent=27 // pred_fallthru
        _
      %p379 = scmp.lt.s32.totalorder %s20, 0
      %s380 = scalar_select %p379, %s20, 0
      %p381 = scmp.lt.s32.totalorder %s21, 1
      %s382 = scalar_select %p381, %s21, 1
      %s383 = smul.addr %s380, 2
      %s384 = sadd.s32 %s382, %s383
      %s385 = smul.addr %s384, 8
      %s386 = scalar_lea.vmem %s2, %s385
      %p387 = scmp.lt.s32.totalorder %s20, 0
      %s388 = scalar_select %p387, %s20, 0
      %p389 = scmp.lt.s32.totalorder %s21, 1
      %s390 = scalar_select %p389, %s21, 1
      %s391 = smul.addr %s388, 2
      %s392 = sadd.s32 %s390, %s391
      %s393 = smul.addr %s392, 8
      %s394 = scalar_lea.vmem %s3, %s393
      // Predicated region
      $region37: #{tpu_custom_call.1} parent=27 // pred_check
        %p395 = pneg %p114
      $region38: #{tpu_custom_call.1} parent=27 // pred_check_branch
        %397 = sbr.rel (%p395) target = $region40
      $region39: #{tpu_custom_call.1} parent=27 // pred_region
        _
      $region40: #{tpu_custom_call.1} parent=27 // pred_fallthru
        _
      // Predicated region
      $region41: #{tpu_custom_call.1} parent=27 // pred_check
        %p398 = pneg %p142
      $region42: #{tpu_custom_call.1} parent=27 // pred_check_branch
        %400 = sbr.rel (%p398) target = $region44
      $region43: #{tpu_custom_call.1} parent=27 // pred_region
        _
      $region44: #{tpu_custom_call.1} parent=27 // pred_fallthru
        _
    $region28: #{tpu_custom_call.1} parent=5 // pred_fallthru
      _
    %p401 = scmp.le.s32.totalorder 2, %s10
    // Predicated region
    $region45: #{tpu_custom_call.1} parent=5 // pred_check
      %p402 = pneg %p401
    $region46: #{tpu_custom_call.1} parent=5 // pred_check_branch
      %404 = sbr.rel (%p402) target = $region48
    $region47: #{tpu_custom_call.1} parent=5 // pred_region
      %s405 = ssub.s32 %s10, 2
      // Predicated region
      $region49: #{tpu_custom_call.1} parent=47 // pred_check
        %p406 = pneg %p120
      $region50: #{tpu_custom_call.1} parent=47 // pred_check_branch
        %408 = sbr.rel (%p406) target = $region52
      $region51: #{tpu_custom_call.1} parent=47 // pred_region
        %p409 = scmp.lt.s32.totalorder %s23, 0
        %s410 = scalar_select %p409, %s23, 0
        %p411 = scmp.lt.s32.totalorder %s24, 1
        %s412 = scalar_select %p411, %s24, 1
        %s413 = smul.addr %s410, 2
        %s414 = sadd.s32 %s412, %s413
        %s415 = smul.addr %s414, 8
        %s416 = scalar_lea.vmem %s2, %s415
      $region52: #{tpu_custom_call.1} parent=47 // pred_fallthru
        _
      // Predicated region
      $region53: #{tpu_custom_call.1} parent=47 // pred_check
        %p417 = pneg %p148
      $region54: #{tpu_custom_call.1} parent=47 // pred_check_branch
        %419 = sbr.rel (%p417) target = $region56
      $region55: #{tpu_custom_call.1} parent=47 // pred_region
        %p420 = scmp.lt.s32.totalorder %s23, 0
        %s421 = scalar_select %p420, %s23, 0
        %p422 = scmp.lt.s32.totalorder %s24, 1
        %s423 = scalar_select %p422, %s24, 1
        %s424 = smul.addr %s421, 2
        %s425 = sadd.s32 %s423, %s424
        %s426 = smul.addr %s425, 8
        %s427 = scalar_lea.vmem %s3, %s426
      $region56: #{tpu_custom_call.1} parent=47 // pred_fallthru
        _
    $region48: #{tpu_custom_call.1} parent=5 // pred_fallthru
      _
  $region6: #{tpu_custom_call.1} parent=0 // loop_footer
    %s14 = sadd.s32 1, %s10
  $region7: #{tpu_custom_call.1} parent=0 // loop_footer_branch
    %9 = sbr.rel target = $region3
  $region8: #{tpu_custom_call.1} parent=0 // loop_exit
    _

</llo_original>
